<compile_context>
chip_gen: v7x
topology: tpu7x:2x2x1
jax: 0.10.0
libtpu: 0.0.40
codegen_flags: <defaults>
</compile_context>

<pallas_src>
import functools

import jax
import jax.numpy as jnp
from jax.experimental import pallas as pl
from jax.experimental.pallas import tpu as pltpu


# ---------------------------------------------------------------------------
# Kernel
# ---------------------------------------------------------------------------
def koopman_kernel(qt_ref, qtt_ref, w1_ref, b1_ref, w2_ref, b2_ref, out_ref):
    """q_ttt = 2*q_tt - q_t - fout(relu(f1(q_t))) -- whole hot path in one pass."""
    qt = qt_ref[...]                               # (tb, D) activations (f32)
    cdt = w1_ref.dtype                             # bf16 (default) or f32 weights
    # f1: Linear(q_dim, q_dim) + ReLU  (MXU, f32 accumulation)
    h = jnp.dot(qt.astype(cdt), w1_ref[...],
                preferred_element_type=jnp.float32) + b1_ref[...]
    h = jnp.maximum(h, 0.0)
    # fout: Linear(q_dim, q_dim); its bias is folded into the epilogue combine.
    lin = jnp.dot(h.astype(cdt), w2_ref[...],
                  preferred_element_type=jnp.float32)
    out_ref[...] = (2.0 * qtt_ref[...] - qt - lin - b2_ref[...]).astype(out_ref.dtype)


# ---------------------------------------------------------------------------
# Tiling (generation aware, decided once at import / trace time)
# ---------------------------------------------------------------------------
_TILE_TARGET_BYTES = 2 << 20       # ~2 MiB activation tile -> ~85%+ of HBM roofline
_SINGLE_TILE_MAX_BYTES = 4 << 20   # below this, a 1-step grid wins on single-TC chips


def _tensorcores_per_device():
    """1 for single-TC chips (v2/v3 per-core devices, v5e, v6e); 2 otherwise."""
    try:
        kind = jax.devices()[0].device_kind.lower()
    except Exception:  # no backend yet / CPU fallback: splitting is harmless
        return 2
    single_tc = ("v2", "v3", "v5e", "v5 lite", "v5lite", "v6e", "v6 lite", "v6lite")
    if any(t in kind for t in single_tc):
        return 1
    return 2  # v4 / v5p megacore, v7x: grid axes marked "parallel" shard across 2 TCs


_NUM_TC = _tensorcores_per_device()


def _round_up(x, m):
    return ((x + m - 1) // m) * m


def _pick_tb(B, D, itemsize, num_tc):
    """Rows per batch tile."""
    row_bytes = D * itemsize
    min_tiles = 2 if (num_tc >= 2 and B >= 16) else 1   # keep both TensorCores busy
    if min_tiles == 1 and B * row_bytes <= _SINGLE_TILE_MAX_BYTES:
        # Single grid step: block == full array (always a legal block shape),
        # no per-step overhead, no extra DMA boundary.
        return B
    tb_target = max(8, _TILE_TARGET_BYTES // row_bytes)  # ~2 MiB per activation tile
    n = max(min_tiles, -(-B // tb_target))
    if num_tc >= 2 and n % 2:
        n += 1                                           # even tile count across 2 TCs
    return _round_up(-(-B // n), 8)                      # sublane-aligned rows/tile


# ---------------------------------------------------------------------------
# pallas_call builder (cached on the static configuration)
# ---------------------------------------------------------------------------
@functools.lru_cache(maxsize=None)
def _build_call(B, D, tb, act_dtype, w_dtype, out_dtype):
    act_b = jnp.dtype(act_dtype).itemsize
    w_b = jnp.dtype(w_dtype).itemsize
    out_b = jnp.dtype(out_dtype).itemsize
    # Double-buffered activation/output tiles + VMEM-resident weights/biases.
    vmem_needed = (
        2 * 2 * tb * D * act_b                 # q_t, q_tt
        + 2 * tb * D * out_b                   # output
        + 2 * 2 * (D * D * w_b + D * 4)        # W1, W2, b1, b2 (constant index_map)
    )
    vmem_limit = int(min(max(vmem_needed + (16 << 20), 32 << 20), 64 << 20))

    const = lambda i: (0, 0)
    return pl.pallas_call(
        koopman_kernel,
        out_shape=jax.ShapeDtypeStruct((B, D), jnp.dtype(out_dtype)),
        grid_spec=pl.GridSpec(
            # Ragged last tile is handled by Pallas (masked store); rows are
            # independent so the stale rows of a partial input block are inert.
            grid=(pl.cdiv(B, tb),),
            in_specs=[
                pl.BlockSpec((tb, D), lambda i: (i, 0)),   # q_t
                pl.BlockSpec((tb, D), lambda i: (i, 0)),   # q_tt
                pl.BlockSpec((D, D), const),               # W1 (in, out), VMEM-resident
                pl.BlockSpec((1, D), const),               # b1
                pl.BlockSpec((D, D), const),               # W2 (in, out)
                pl.BlockSpec((1, D), const),               # b2
            ],
            out_specs=pl.BlockSpec((tb, D), lambda i: (i, 0)),
        ),
        compiler_params=pltpu.CompilerParams(
            dimension_semantics=("parallel",),
            vmem_limit_bytes=vmem_limit,
        ),
    )


# ---------------------------------------------------------------------------
# Public forward
# ---------------------------------------------------------------------------
@functools.partial(jax.jit, static_argnames=("tb", "param_dtype", "out_dtype"))
def koopman_forward(q_t, q_tt, w1, b1, w2, b2, *, tb=None,
                    param_dtype=jnp.bfloat16, out_dtype=None):
    """q_ttt = 2*q_tt - q_t - fout(relu(f1(q_t))).

    Weights are cast to `param_dtype` (bf16 by default: native single-pass MXU
    dtype on v5e/v6e/v7x and half the weight DMA).  NOTE: the f32 activations
    are also fed to the MXU in `param_dtype`, so bf16 results differ from the
    PyTorch f32 reference at ~1e-2 relative; pass param_dtype=jnp.float32 for
    the bit-exact path.  `out_dtype` (default: q_t.dtype) can be set to
    bfloat16 to halve output writeback traffic if downstream tolerates it.
    """
    B, D = q_t.shape
    assert q_tt.shape == (B, D)
    if param_dtype is not None:
        w1 = w1.astype(param_dtype)
        w2 = w2.astype(param_dtype)
    b1 = jnp.asarray(b1, jnp.float32).reshape(1, D)
    b2 = jnp.asarray(b2, jnp.float32).reshape(1, D)
    out_dt = jnp.dtype(q_t.dtype if out_dtype is None else out_dtype)

    if tb is None:
        tb = _pick_tb(B, D, jnp.dtype(q_t.dtype).itemsize, _NUM_TC)
    else:
        assert tb % 8 == 0, "batch tile must be a sublane multiple (8)"

    call = _build_call(int(B), int(D), int(tb),
                       jnp.dtype(q_t.dtype), jnp.dtype(w1.dtype), out_dt)
    return call(q_t, q_tt, w1, b1, w2, b2)


def koopman_forward_ref(q_t, q_tt, w1, b1, w2, b2):
    h = jnp.maximum(q_t @ w1 + b1.reshape(1, -1), 0.0)
    return 2.0 * q_tt - q_t - (h @ w2 + b2.reshape(1, -1))


if __name__ == "__main__":
    B, Q = 512, 128  # batch rows, q_dim (Koopman latent size)

    key = jax.random.PRNGKey(0)
    k_qt, k_qtt, k_w1, k_b1, k_w2, k_b2 = jax.random.split(key, 6)

    q_t = jax.random.normal(k_qt, (B, Q), dtype=jnp.float32)
    q_tt = jax.random.normal(k_qtt, (B, Q), dtype=jnp.float32)

    # nn.Linear-style init: U(-1/sqrt(q_dim), 1/sqrt(q_dim)); weights stored (in, out).
    bound = 1.0 / float(Q) ** 0.5
    w1 = jax.random.uniform(k_w1, (Q, Q), jnp.float32, -bound, bound)
    b1 = jax.random.uniform(k_b1, (1, Q), jnp.float32, -bound, bound)
    w2 = jax.random.uniform(k_w2, (Q, Q), jnp.float32, -bound, bound)
    b2 = jax.random.uniform(k_b2, (1, Q), jnp.float32, -bound, bound)

    ref = koopman_forward_ref(q_t, q_tt, w1, b1, w2, b2)

    # 1) bit-exact path: f32 weights + f32 accumulation.
    out_f32 = jax.block_until_ready(
        koopman_forward(q_t, q_tt, w1, b1, w2, b2, param_dtype=jnp.float32))
    assert out_f32.shape == (B, Q)
    assert jnp.allclose(out_f32, ref, atol=1e-5, rtol=1e-5)

    # 2) perf path: default bf16 weights + ragged batch (exercises the masked
    #    partial last tile -- no host-side pad/slice).
    Br = 300
    out_bf16 = jax.block_until_ready(
        koopman_forward(q_t[:Br], q_tt[:Br], w1, b1, w2, b2))
    assert out_bf16.shape == (Br, Q)
    assert jnp.allclose(out_bf16, ref[:Br], atol=2e-2, rtol=2e-2)

    # TODO(synk): encoder/decoder submodules are external, undefined args in the
    # module source; only the core forward() (f1 -> relu -> fout + linear combo)
    # is kernelized here.
    print("KERNEL_OK")
</pallas_src>

<mosaic_0001>
module attributes {stable_mosaic.version = 11 : i64} {
  func.func @koopman_kernel(%arg0: i32, %arg1: memref<256x128xf32, #tpu.memory_space<vmem>>, %arg2: memref<256x128xf32, #tpu.memory_space<vmem>>, %arg3: memref<128x128xf32, #tpu.memory_space<vmem>>, %arg4: memref<1x128xf32, #tpu.memory_space<vmem>>, %arg5: memref<128x128xf32, #tpu.memory_space<vmem>>, %arg6: memref<1x128xf32, #tpu.memory_space<vmem>>, %arg7: memref<256x128xf32, #tpu.memory_space<vmem>>) attributes {dimension_semantics = [#tpu.dimension_semantics<parallel>], iteration_bounds = array<i64: 2>, scalar_prefetch = 0 : i64, scratch_operands = 0 : i64, tpu.core_type = #tpu.core_type<tc>, window_params = [{transform_indices = @transform_0, window_bounds = array<i64: 256, 128>}, {transform_indices = @transform_1, window_bounds = array<i64: 256, 128>}, {pipeline_mode = #tpu.pipeline_mode<synchronous>, transform_indices = @transform_2, window_bounds = array<i64: 128, 128>}, {pipeline_mode = #tpu.pipeline_mode<synchronous>, transform_indices = @transform_3, window_bounds = array<i64: 1, 128>}, {pipeline_mode = #tpu.pipeline_mode<synchronous>, transform_indices = @transform_4, window_bounds = array<i64: 128, 128>}, {pipeline_mode = #tpu.pipeline_mode<synchronous>, transform_indices = @transform_5, window_bounds = array<i64: 1, 128>}, {transform_indices = @transform_6, window_bounds = array<i64: 256, 128>}]} {
    %c0 = arith.constant 0 : index
    %c0_0 = arith.constant 0 : index
    %0 = vector.load %arg1[%c0, %c0_0] : memref<256x128xf32, #tpu.memory_space<vmem>>, vector<256x128xf32>
    %c0_1 = arith.constant 0 : index
    %c0_2 = arith.constant 0 : index
    %1 = vector.load %arg3[%c0_1, %c0_2] : memref<128x128xf32, #tpu.memory_space<vmem>>, vector<128x128xf32>
    %cst = arith.constant dense<0.000000e+00> : vector<256x128xf32>
    %2 = tpu.matmul %0, %1, %cst {dimension_numbers = #tpu.dot_dimension_numbers<[1], [0], [0], [1], [0, 0, 1, 1], [], []>} : vector<256x128xf32>, vector<128x128xf32>, vector<256x128xf32> -> vector<256x128xf32>
    %c0_3 = arith.constant 0 : index
    %c0_4 = arith.constant 0 : index
    %3 = vector.load %arg4[%c0_3, %c0_4] : memref<1x128xf32, #tpu.memory_space<vmem>>, vector<1x128xf32>
    %4 = vector.broadcast %3 : vector<1x128xf32> to vector<256x128xf32>
    %5 = arith.addf %2, %4 : vector<256x128xf32>
    %cst_5 = arith.constant 0.000000e+00 : f32
    %6 = vector.broadcast %cst_5 : f32 to vector<256x128xf32>
    %7 = arith.maximumf %5, %6 : vector<256x128xf32>
    %c0_6 = arith.constant 0 : index
    %c0_7 = arith.constant 0 : index
    %8 = vector.load %arg5[%c0_6, %c0_7] : memref<128x128xf32, #tpu.memory_space<vmem>>, vector<128x128xf32>
    %cst_8 = arith.constant dense<0.000000e+00> : vector<256x128xf32>
    %9 = tpu.matmul %7, %8, %cst_8 {dimension_numbers = #tpu.dot_dimension_numbers<[1], [0], [0], [1], [0, 0, 1, 1], [], []>} : vector<256x128xf32>, vector<128x128xf32>, vector<256x128xf32> -> vector<256x128xf32>
    %c0_9 = arith.constant 0 : index
    %c0_10 = arith.constant 0 : index
    %10 = vector.load %arg2[%c0_9, %c0_10] : memref<256x128xf32, #tpu.memory_space<vmem>>, vector<256x128xf32>
    %cst_11 = arith.constant 2.000000e+00 : f32
    %11 = vector.broadcast %cst_11 : f32 to vector<256x128xf32>
    %12 = arith.mulf %11, %10 : vector<256x128xf32>
    %13 = arith.subf %12, %0 : vector<256x128xf32>
    %14 = arith.subf %13, %9 : vector<256x128xf32>
    %c0_12 = arith.constant 0 : index
    %c0_13 = arith.constant 0 : index
    %15 = vector.load %arg6[%c0_12, %c0_13] : memref<1x128xf32, #tpu.memory_space<vmem>>, vector<1x128xf32>
    %16 = vector.broadcast %15 : vector<1x128xf32> to vector<256x128xf32>
    %17 = arith.subf %14, %16 : vector<256x128xf32>
    %c0_14 = arith.constant 0 : index
    %c0_15 = arith.constant 0 : index
    %18 = vector.load %arg7[%c0_14, %c0_15] : memref<256x128xf32, #tpu.memory_space<vmem>>, vector<256x128xf32>
    tpu.vector_store %arg7[%c0_14, %c0_15], %17 {strides = array<i32>} : memref<256x128xf32, #tpu.memory_space<vmem>>, vector<256x128xf32>,
    return
  }
  func.func @transform_0(%arg0: i32) -> (i32, i32) {
    %c0_i32 = arith.constant 0 : i32
    %c0_i32_0 = arith.constant 0 : i32
    return %arg0, %c0_i32 : i32, i32
  }
  func.func @transform_1(%arg0: i32) -> (i32, i32) {
    %c0_i32 = arith.constant 0 : i32
    %c0_i32_0 = arith.constant 0 : i32
    return %arg0, %c0_i32 : i32, i32
  }
  func.func @transform_2(%arg0: i32) -> (i32, i32) {
    %c0_i32 = arith.constant 0 : i32
    %c0_i32_0 = arith.constant 0 : i32
    %c0_i32_1 = arith.constant 0 : i32
    return %c0_i32, %c0_i32_0 : i32, i32
  }
  func.func @transform_3(%arg0: i32) -> (i32, i32) {
    %c0_i32 = arith.constant 0 : i32
    %c0_i32_0 = arith.constant 0 : i32
    %c0_i32_1 = arith.constant 0 : i32
    return %c0_i32, %c0_i32_0 : i32, i32
  }
  func.func @transform_4(%arg0: i32) -> (i32, i32) {
    %c0_i32 = arith.constant 0 : i32
    %c0_i32_0 = arith.constant 0 : i32
    %c0_i32_1 = arith.constant 0 : i32
    return %c0_i32, %c0_i32_0 : i32, i32
  }
  func.func @transform_5(%arg0: i32) -> (i32, i32) {
    %c0_i32 = arith.constant 0 : i32
    %c0_i32_0 = arith.constant 0 : i32
    %c0_i32_1 = arith.constant 0 : i32
    return %c0_i32, %c0_i32_0 : i32, i32
  }
  func.func @transform_6(%arg0: i32) -> (i32, i32) {
    %c0_i32 = arith.constant 0 : i32
    %c0_i32_0 = arith.constant 0 : i32
    return %arg0, %c0_i32 : i32, i32
  }
}

</mosaic_0001>

<llo_original>
// kernel: koopman_forward.1
$region0: #{koopman_forward.1}
  #allocation0 [shape = 'u32[]', space=smem, size = 0x4, offset = 0x4, fixed_abs, tag = 'smem constant byte address 0x4 - core index']
  #allocation1 [shape = 'u32[144,128]{1,0:T(1,128)}', space=vmem, size = 0x12000, scoped, tag = 'internal scratch']
  %s0 = inlined_call_operand.hbm [shape: f32[512,128], index: 0, kind: input, shape index: {}]
  %s1 = inlined_call_operand.hbm [shape: f32[512,128], index: 1, kind: input, shape index: {}]
  %s2 = inlined_call_operand.hbm [shape: f32[128,128], index: 2, kind: input, shape index: {}]
  %s3 = inlined_call_operand.vmem [shape: f32[1,128], index: 3, kind: input, shape index: {}]
  %s4 = inlined_call_operand.hbm [shape: f32[128,128], index: 4, kind: input, shape index: {}]
  %s5 = inlined_call_operand.vmem [shape: f32[1,128], index: 5, kind: input, shape index: {}]
  %s6 = inlined_call_operand.hbm [shape: f32[512,128], index: 6, kind: output, shape index: {}]
  %s7 = sld [smem:[#allocation0]]
  $region73: #{koopman_forward.1} parent=0
    _
  %s9 = ssub.s32 1, %s7
  %s10 = scalar_select 0, %s9, %s7
  $region1: #{koopman_forward.1} parent=0
    #allocation2 [shape = 'u8[262144]{0}', space=vmem, size = 0x40000, scoped, tag = 'input window, operand 0']
    #allocation3 [shape = 's32[2]{0}', space=sflag, size = 0x8, scoped, tag = 'scoped memory for koopman_forward.1']
    #allocation4 [shape = 's32[2]{0}', space=sflag, size = 0x8, scoped, tag = 'scoped memory for koopman_forward.1']
    #allocation5 [shape = 'u8[262144]{0}', space=vmem, size = 0x40000, scoped, tag = 'input window, operand 1']
    #allocation6 [shape = 's32[2]{0}', space=sflag, size = 0x8, scoped, tag = 'scoped memory for koopman_forward.1']
    #allocation7 [shape = 'u8[65536]{0}', space=vmem, size = 0x10000, scoped, tag = 'input window, operand 2, single buffered']
    #allocation8 [shape = 'u8[65536]{0}', space=vmem, size = 0x10000, scoped, tag = 'input window, operand 4, single buffered']
    #allocation9 [shape = 's32[1]{0}', space=sflag, size = 0x4, scoped, tag = 'scoped memory for koopman_forward.1']
    #allocation10 [shape = 'u8[262144]{0}', space=vmem, size = 0x40000, scoped, tag = 'output window, operand 0']
    %11 = vsyncpa [#allocation3], 0
    %s12 = scalar_lea.sflag [#allocation3], 1
    %13 = vsyncpa %s12, 0
    %14 = vsyncpa [#allocation6], 0
    %s15 = scalar_lea.sflag [#allocation6], 1
    %16 = vsyncpa %s15, 0
    %17 = vsyncpa [#allocation9], 0
    %18 = vsyncpa [#allocation4], 0
    %s19 = scalar_lea.sflag [#allocation4], 1
    %20 = vsyncpa %s19, 0
    loop: start=0, step=1, limit=4
    $region2: #{koopman_forward.1} parent=1 // loop_pre_header
      _
    $region3: #{koopman_forward.1} parent=1 // loop_header
      %s22 = sphi 0, %s26
      %p23 = scmp.ge.s32.totalorder %s22, 4
      %s32 = sphi 0, %s34
      %s35 = sphi 0, %s32
      %s36 = sphi 0, %s35
      %s52 = sphi 0, %s36
      %s58 = sphi 0, %s60
      %s61 = sphi 0, %s58
      %s62 = sphi 0, %s61
      %s78 = sphi 0, %s62
      %s82 = sphi 0, %s82
      %s84 = sphi 0, %s82
      %s85 = sphi 0, %s84
      %s99 = sphi 0, %s85
      %s103 = sphi 0, %s103
      %s105 = sphi 0, %s103
      %s106 = sphi 0, %s105
      %s120 = sphi 0, %s106
      %s124 = sphi 0, %s124
      %s126 = sphi 0, %s124
      %s127 = sphi 0, %s126
      %s141 = sphi 0, %s127
      %s145 = sphi 0, %s145
      %s147 = sphi 0, %s145
      %s148 = sphi 0, %s147
      %s162 = sphi 0, %s148
      %s168 = sphi 0, %s170
      %s171 = sphi 0, %s168
      %s172 = sphi 0, %s171
      %s188 = sphi 0, %s172
    $region4: #{koopman_forward.1} parent=1 // loop_header_branch
      %25 = sbr.rel (%p23) target = $region8
    $region5: #{koopman_forward.1} parent=1 // loop_body
      %s27 = ssub.s32 %s22, 1
      %s28 = ssub.s32 %s22, 2
      %s29 = sadd.s32 %s22, 1
      %s30 = ssub.s32 %s22, %s29
      %p31 = scmp.eq.s32.totalorder %s30, 0
      %s33 = sadd.s32 %s32, 1
      %s34 = scalar_select %p31, %s32, %s33
      %p37 = pneg %p31
      %p38 = scmp.eq.s32.totalorder %s22, 1
      %p39 = por %p37, %p38
      %p40 = scmp.ne.s32.totalorder %s32, %s35
      %p41 = scmp.eq.s32.totalorder %s22, 0
      %p42 = por %p40, %p41
      %p43 = scmp.ne.s32.totalorder %s32, %s35
      %p44 = scmp.eq.s32.totalorder %s27, 1
      %p45 = por %p43, %p44
      %p46 = scmp.ne.s32.totalorder %s35, %s36
      %p47 = scmp.eq.s32.totalorder %s27, 0
      %p48 = por %p46, %p47
      %p49 = scmp.ne.s32.totalorder %s35, %s36
      %p50 = scmp.eq.s32.totalorder %s28, 1
      %p51 = por %p49, %p50
      %p53 = scmp.ne.s32.totalorder %s36, %s52
      %p54 = scmp.eq.s32.totalorder %s28, 0
      %p55 = por %p53, %p54
      %s56 = ssub.s32 %s22, %s29
      %p57 = scmp.eq.s32.totalorder %s56, 0
      %s59 = sadd.s32 %s58, 1
      %s60 = scalar_select %p57, %s58, %s59
      %p63 = pneg %p57
      %p64 = scmp.eq.s32.totalorder %s22, 1
      %p65 = por %p63, %p64
      %p66 = scmp.ne.s32.totalorder %s58, %s61
      %p67 = scmp.eq.s32.totalorder %s22, 0
      %p68 = por %p66, %p67
      %p69 = scmp.ne.s32.totalorder %s58, %s61
      %p70 = scmp.eq.s32.totalorder %s27, 1
      %p71 = por %p69, %p70
      %p72 = scmp.ne.s32.totalorder %s61, %s62
      %p73 = scmp.eq.s32.totalorder %s27, 0
      %p74 = por %p72, %p73
      %p75 = scmp.ne.s32.totalorder %s61, %s62
      %p76 = scmp.eq.s32.totalorder %s28, 1
      %p77 = por %p75, %p76
      %p79 = scmp.ne.s32.totalorder %s62, %s78
      %p80 = scmp.eq.s32.totalorder %s28, 0
      %p81 = por %p79, %p80
      %s83 = sadd.s32 %s82, 1
      %p86 = scmp.eq.s32.totalorder %s22, 1
      %p87 = scmp.ne.s32.totalorder %s82, %s84
      %p88 = scmp.eq.s32.totalorder %s22, 0
      %p89 = por %p87, %p88
      %p90 = scmp.ne.s32.totalorder %s82, %s84
      %p91 = scmp.eq.s32.totalorder %s27, 1
      %p92 = por %p90, %p91
      %p93 = scmp.ne.s32.totalorder %s84, %s85
      %p94 = scmp.eq.s32.totalorder %s27, 0
      %p95 = por %p93, %p94
      %p96 = scmp.ne.s32.totalorder %s84, %s85
      %p97 = scmp.eq.s32.totalorder %s28, 1
      %p98 = por %p96, %p97
      %p100 = scmp.ne.s32.totalorder %s85, %s99
      %p101 = scmp.eq.s32.totalorder %s28, 0
      %p102 = por %p100, %p101
      %s104 = sadd.s32 %s103, 1
      %p107 = scmp.eq.s32.totalorder %s22, 1
      %p108 = scmp.ne.s32.totalorder %s103, %s105
      %p109 = scmp.eq.s32.totalorder %s22, 0
      %p110 = por %p108, %p109
      %p111 = scmp.ne.s32.totalorder %s103, %s105
      %p112 = scmp.eq.s32.totalorder %s27, 1
      %p113 = por %p111, %p112
      %p114 = scmp.ne.s32.totalorder %s105, %s106
      %p115 = scmp.eq.s32.totalorder %s27, 0
      %p116 = por %p114, %p115
      %p117 = scmp.ne.s32.totalorder %s105, %s106
      %p118 = scmp.eq.s32.totalorder %s28, 1
      %p119 = por %p117, %p118
      %p121 = scmp.ne.s32.totalorder %s106, %s120
      %p122 = scmp.eq.s32.totalorder %s28, 0
      %p123 = por %p121, %p122
      %s125 = sadd.s32 %s124, 1
      %p128 = scmp.eq.s32.totalorder %s22, 1
      %p129 = scmp.ne.s32.totalorder %s124, %s126
      %p130 = scmp.eq.s32.totalorder %s22, 0
      %p131 = por %p129, %p130
      %p132 = scmp.ne.s32.totalorder %s124, %s126
      %p133 = scmp.eq.s32.totalorder %s27, 1
      %p134 = por %p132, %p133
      %p135 = scmp.ne.s32.totalorder %s126, %s127
      %p136 = scmp.eq.s32.totalorder %s27, 0
      %p137 = por %p135, %p136
      %p138 = scmp.ne.s32.totalorder %s126, %s127
      %p139 = scmp.eq.s32.totalorder %s28, 1
      %p140 = por %p138, %p139
      %p142 = scmp.ne.s32.totalorder %s127, %s141
      %p143 = scmp.eq.s32.totalorder %s28, 0
      %p144 = por %p142, %p143
      %s146 = sadd.s32 %s145, 1
      %p149 = scmp.eq.s32.totalorder %s22, 1
      %p150 = scmp.ne.s32.totalorder %s145, %s147
      %p151 = scmp.eq.s32.totalorder %s22, 0
      %p152 = por %p150, %p151
      %p153 = scmp.ne.s32.totalorder %s145, %s147
      %p154 = scmp.eq.s32.totalorder %s27, 1
      %p155 = por %p153, %p154
      %p156 = scmp.ne.s32.totalorder %s147, %s148
      %p157 = scmp.eq.s32.totalorder %s27, 0
      %p158 = por %p156, %p157
      %p159 = scmp.ne.s32.totalorder %s147, %s148
      %p160 = scmp.eq.s32.totalorder %s28, 1
      %p161 = por %p159, %p160
      %p163 = scmp.ne.s32.totalorder %s148, %s162
      %p164 = scmp.eq.s32.totalorder %s28, 0
      %p165 = por %p163, %p164
      %s166 = ssub.s32 %s22, %s29
      %p167 = scmp.eq.s32.totalorder %s166, 0
      %s169 = sadd.s32 %s168, 1
      %s170 = scalar_select %p167, %s168, %s169
      %p173 = pneg %p167
      %p174 = scmp.eq.s32.totalorder %s22, 1
      %p175 = por %p173, %p174
      %p176 = scmp.ne.s32.totalorder %s168, %s171
      %p177 = scmp.eq.s32.totalorder %s22, 0
      %p178 = por %p176, %p177
      %p179 = scmp.ne.s32.totalorder %s168, %s171
      %p180 = scmp.eq.s32.totalorder %s27, 1
      %p181 = por %p179, %p180
      %p182 = scmp.ne.s32.totalorder %s171, %s172
      %p183 = scmp.eq.s32.totalorder %s27, 0
      %p184 = por %p182, %p183
      %p185 = scmp.ne.s32.totalorder %s171, %s172
      %p186 = scmp.eq.s32.totalorder %s28, 1
      %p187 = por %p185, %p186
      %p189 = scmp.ne.s32.totalorder %s172, %s188
      %p190 = scmp.eq.s32.totalorder %s28, 0
      %p191 = por %p189, %p190
      %p192 = scmp.le.s32.totalorder 1, %s22
      %p193 = scmp.lt.s32.totalorder %s22, 3
      %p194 = pnand %p192, %p193
      %p195 = pneg %p194
      // Predicated region
      $region9: #{koopman_forward.1} parent=5 // pred_check
        _
      $region10: #{koopman_forward.1} parent=5 // pred_check_branch
        %197 = sbr.rel (%p194) target = $region12
      $region11: #{koopman_forward.1} parent=5 // pred_region
        %s198 = ssub.s32 %s22, 1
        // Predicated region
        $region13: #{koopman_forward.1} parent=11 // pred_check
          %p199 = pneg %p95
        $region14: #{koopman_forward.1} parent=11 // pred_check_branch
          %201 = sbr.rel (%p199) target = $region16
        $region15: #{koopman_forward.1} parent=11 // pred_region
          %s203 = ssub.s32 2048, 2048
          %204 = vsyncadd [#allocation6], %s203
          %s205 = sshll.u32 [#allocation7], 4
          %s206 = int_to_ptr.vmem [resolvable:$true] %s205
          %211 = dma.hbm_to_vmem [thread:$0]  %s2, 2048, %s206, [#allocation6], 128, 128, 8
        $region16: #{koopman_forward.1} parent=11 // pred_fallthru
          _
        // Predicated region
        $region17: #{koopman_forward.1} parent=11 // pred_check
          %p212 = pneg %p116
        $region18: #{koopman_forward.1} parent=11 // pred_check_branch
          %214 = sbr.rel (%p212) target = $region20
        $region19: #{koopman_forward.1} parent=11 // pred_region
          _
        $region20: #{koopman_forward.1} parent=11 // pred_fallthru
          _
        // Predicated region
        $region21: #{koopman_forward.1} parent=11 // pred_check
          %p215 = pneg %p137
        $region22: #{koopman_forward.1} parent=11 // pred_check_branch
          %217 = sbr.rel (%p215) target = $region24
        $region23: #{koopman_forward.1} parent=11 // pred_region
          %s219 = ssub.s32 2048, 2048
          %220 = vsyncadd [#allocation9], %s219
          %s221 = sshll.u32 [#allocation8], 4
          %s222 = int_to_ptr.vmem [resolvable:$true] %s221
          %227 = dma.hbm_to_vmem [thread:$0]  %s4, 2048, %s222, [#allocation9], 128, 128, 8
        $region24: #{koopman_forward.1} parent=11 // pred_fallthru
          _
        // Predicated region
        $region25: #{koopman_forward.1} parent=11 // pred_check
          %p228 = pneg %p158
        $region26: #{koopman_forward.1} parent=11 // pred_check_branch
          %230 = sbr.rel (%p228) target = $region28
        $region27: #{koopman_forward.1} parent=11 // pred_region
          _
        $region28: #{koopman_forward.1} parent=11 // pred_fallthru
          _
      $region12: #{koopman_forward.1} parent=5 // pred_fallthru
        _
      %p231 = scmp.lt.s32.totalorder %s22, 2
      // Predicated region
      $region29: #{koopman_forward.1} parent=5 // pred_check
        %p232 = pneg %p231
      $region30: #{koopman_forward.1} parent=5 // pred_check_branch
        %234 = sbr.rel (%p232) target = $region32
      $region31: #{koopman_forward.1} parent=5 // pred_region
        // Predicated region
        $region33: #{koopman_forward.1} parent=31 // pred_check
          %p235 = pneg %p42
        $region34: #{koopman_forward.1} parent=31 // pred_check_branch
          %237 = sbr.rel (%p235) target = $region36
        $region35: #{koopman_forward.1} parent=31 // pred_region
          %s238 = sand.u32 %s32, 1
          %s239 = scalar_lea.sflag [#allocation3], %s238
          %s240 = sand.u32 %s32, 1
          %s241 = smul.addr %s240, 256
          %s242 = scalar_lea.vmem [#allocation2], %s241
          %s243 = smul.u32 32, %s22
          %s245 = ssub.s32 4096, 4096
          %246 = vsyncadd %s239, %s245
          %s247 = smul.addr %s243, 128
          %s248 = scalar_lea.hbm %s0, %s247
          %s249 = sshll.u32 %s242, 4
          %s250 = int_to_ptr.vmem [resolvable:$true] %s249
          %255 = dma.hbm_to_vmem [thread:$0]  %s248, 4096, %s250, %s239, 128, 128, 8
        $region36: #{koopman_forward.1} parent=31 // pred_fallthru
          _
        // Predicated region
        $region37: #{koopman_forward.1} parent=31 // pred_check
          %p256 = pneg %p68
        $region38: #{koopman_forward.1} parent=31 // pred_check_branch
          %258 = sbr.rel (%p256) target = $region40
        $region39: #{koopman_forward.1} parent=31 // pred_region
          %s259 = sand.u32 %s22, 1
          %s260 = scalar_lea.sflag [#allocation6], %s259
          %s261 = sand.u32 %s58, 1
          %s262 = smul.addr %s261, 256
          %s263 = scalar_lea.vmem [#allocation5], %s262
          %s264 = smul.u32 32, %s22
          %s266 = ssub.s32 4096, 4096
          %267 = vsyncadd %s260, %s266
          %s268 = smul.addr %s264, 128
          %s269 = scalar_lea.hbm %s1, %s268
          %s270 = sshll.u32 %s263, 4
          %s271 = int_to_ptr.vmem [resolvable:$true] %s270
          %276 = dma.hbm_to_vmem [thread:$0]  %s269, 4096, %s271, %s260, 128, 128, 8
        $region40: #{koopman_forward.1} parent=31 // pred_fallthru
          _
      $region32: #{koopman_forward.1} parent=5 // pred_fallthru
        _
      %p277 = scmp.le.s32.totalorder 1, %s22
      %p278 = scmp.lt.s32.totalorder %s22, 3
      %p279 = pnand %p277, %p278
      %p280 = pneg %p279
      // Predicated region
      $region41: #{koopman_forward.1} parent=5 // pred_check
        _
      $region42: #{koopman_forward.1} parent=5 // pred_check_branch
        %282 = sbr.rel (%p279) target = $region44
      $region43: #{koopman_forward.1} parent=5 // pred_region
        %s283 = ssub.s32 %s22, 1
        %s284 = sand.u32 %s35, 1
        %s285 = scalar_lea.sflag [#allocation3], %s284
        %s286 = sand.u32 %s35, 1
        %s287 = smul.addr %s286, 256
        %s288 = scalar_lea.vmem [#allocation2], %s287
        // Predicated region
        $region45: #{koopman_forward.1} parent=43 // pred_check
          %p289 = pneg %p48
        $region46: #{koopman_forward.1} parent=43 // pred_check_branch
          %291 = sbr.rel (%p289) target = $region48
        $region47: #{koopman_forward.1} parent=43 // pred_region
          %292 = dma.done %s285, 4096
        $region48: #{koopman_forward.1} parent=43 // pred_fallthru
          _
        %s293 = sand.u32 %s27, 1
        %s294 = scalar_lea.sflag [#allocation6], %s293
        %s295 = sand.u32 %s61, 1
        %s296 = smul.addr %s295, 256
        %s297 = scalar_lea.vmem [#allocation5], %s296
        // Predicated region
        $region49: #{koopman_forward.1} parent=43 // pred_check
          %p298 = pneg %p74
        $region50: #{koopman_forward.1} parent=43 // pred_check_branch
          %300 = sbr.rel (%p298) target = $region52
        $region51: #{koopman_forward.1} parent=43 // pred_region
          %301 = dma.done %s294, 4096
        $region52: #{koopman_forward.1} parent=43 // pred_fallthru
          _
        // Predicated region
        $region53: #{koopman_forward.1} parent=43 // pred_check
          %p302 = pneg %p95
        $region54: #{koopman_forward.1} parent=43 // pred_check_branch
          %304 = sbr.rel (%p302) target = $region56
        $region55: #{koopman_forward.1} parent=43 // pred_region
          %305 = dma.done [#allocation6], 2048
        $region56: #{koopman_forward.1} parent=43 // pred_fallthru
          _
        // Predicated region
        $region57: #{koopman_forward.1} parent=43 // pred_check
          %p306 = pneg %p137
        $region58: #{koopman_forward.1} parent=43 // pred_check_branch
          %308 = sbr.rel (%p306) target = $region60
        $region59: #{koopman_forward.1} parent=43 // pred_region
          %309 = dma.done [#allocation9], 2048
        $region60: #{koopman_forward.1} parent=43 // pred_fallthru
          _
        %s310 = sand.u32 %s35, 1
        %s311 = scalar_lea.sflag [#allocation3], %s310
        %s312 = sand.u32 %s35, 1
        %s313 = smul.addr %s312, 256
        %s314 = scalar_lea.vmem [#allocation2], %s313
        %p315 = pneg %p48
        %p316 = pneg %p45
        %s317 = sand.u32 %s27, 1
        %s318 = scalar_lea.sflag [#allocation6], %s317
        %s319 = sand.u32 %s61, 1
        %s320 = smul.addr %s319, 256
        %s321 = scalar_lea.vmem [#allocation5], %s320
        %p322 = pneg %p74
        %p323 = pneg %p71
        %p324 = pneg %p95
        %p325 = pneg %p92
        %p326 = pneg %p116
        %p327 = pneg %p113
        %p328 = pneg %p137
        %p329 = pneg %p134
        %p330 = pneg %p158
        %p331 = pneg %p155
        %p332 = pneg %p184
        %p333 = pneg %p181
        %s334 = sand.u32 %s171, 1
        %s335 = scalar_lea.sflag [#allocation4], %s334
        %s336 = sand.u32 %s171, 1
        %s337 = smul.addr %s336, 256
        %s338 = scalar_lea.vmem [#allocation10], %s337
        %s339 = smul.u32 32, %s27
        %s340 = smul.u32 32, %s27
        %s341 = smul.u32 32, %s27
        %v342 = vld [vmem:[%s288] sm:$0xff]
        %v343 = vld [vmem:[%s288 + $0x8] sm:$0xff]
        %v344 = vld [vmem:[%s288 + $0x10] sm:$0xff]
        %v345 = vld [vmem:[%s288 + $0x18] sm:$0xff]
        %v346 = vld [vmem:[%s288 + $0x20] sm:$0xff]
        %v347 = vld [vmem:[%s288 + $0x28] sm:$0xff]
        %v348 = vld [vmem:[%s288 + $0x30] sm:$0xff]
        %v349 = vld [vmem:[%s288 + $0x38] sm:$0xff]
        %v350 = vld [vmem:[%s288 + $0x40] sm:$0xff]
        %v351 = vld [vmem:[%s288 + $0x48] sm:$0xff]
        %v352 = vld [vmem:[%s288 + $0x50] sm:$0xff]
        %v353 = vld [vmem:[%s288 + $0x58] sm:$0xff]
        %v354 = vld [vmem:[%s288 + $0x60] sm:$0xff]
        %v355 = vld [vmem:[%s288 + $0x68] sm:$0xff]
        %v356 = vld [vmem:[%s288 + $0x70] sm:$0xff]
        %v357 = vld [vmem:[%s288 + $0x78] sm:$0xff]
        %v358 = vld [vmem:[%s288 + $0x80] sm:$0xff]
        %v359 = vld [vmem:[%s288 + $0x88] sm:$0xff]
        %v360 = vld [vmem:[%s288 + $0x90] sm:$0xff]
        %v361 = vld [vmem:[%s288 + $0x98] sm:$0xff]
        %v362 = vld [vmem:[%s288 + $0xa0] sm:$0xff]
        %v363 = vld [vmem:[%s288 + $0xa8] sm:$0xff]
        %v364 = vld [vmem:[%s288 + $0xb0] sm:$0xff]
        %v365 = vld [vmem:[%s288 + $0xb8] sm:$0xff]
        %v366 = vld [vmem:[%s288 + $0xc0] sm:$0xff]
        %v367 = vld [vmem:[%s288 + $0xc8] sm:$0xff]
        %v368 = vld [vmem:[%s288 + $0xd0] sm:$0xff]
        %v369 = vld [vmem:[%s288 + $0xd8] sm:$0xff]
        %v370 = vld [vmem:[%s288 + $0xe0] sm:$0xff]
        %v371 = vld [vmem:[%s288 + $0xe8] sm:$0xff]
        %v372 = vld [vmem:[%s288 + $0xf0] sm:$0xff]
        %v373 = vld [vmem:[%s288 + $0xf8] sm:$0xff]
        %v374 = vld [vmem:[#allocation7] sm:$0xff]
        %v375 = vld [vmem:[#allocation7 + $0x8] sm:$0xff]
        %v376 = vld [vmem:[#allocation7 + $0x10] sm:$0xff]
        %v377 = vld [vmem:[#allocation7 + $0x18] sm:$0xff]
        %v378 = vld [vmem:[#allocation7 + $0x20] sm:$0xff]
        %v379 = vld [vmem:[#allocation7 + $0x28] sm:$0xff]
        %v380 = vld [vmem:[#allocation7 + $0x30] sm:$0xff]
        %v381 = vld [vmem:[#allocation7 + $0x38] sm:$0xff]
        %v382 = vld [vmem:[#allocation7 + $0x40] sm:$0xff]
        %v383 = vld [vmem:[#allocation7 + $0x48] sm:$0xff]
        %v384 = vld [vmem:[#allocation7 + $0x50] sm:$0xff]
        %v385 = vld [vmem:[#allocation7 + $0x58] sm:$0xff]
        %v386 = vld [vmem:[#allocation7 + $0x60] sm:$0xff]
        %v387 = vld [vmem:[#allocation7 + $0x68] sm:$0xff]
        %v388 = vld [vmem:[#allocation7 + $0x70] sm:$0xff]
        %v389 = vld [vmem:[#allocation7 + $0x78] sm:$0xff]
        %v390 = vld [vmem:[%s3] sm:$0x1]
        %v392 = vlaneseq
        %v393 = vshrl.u32 %v392, 7
        %v394 = vsub.s32 0, %v393
        %v395 = vrot.slane %v390, %v394
        %397 = vmatprep.subr.mxu0 0.0
        %398 = vmatpush1.msra.mxu0 %v374
        %399 = vmatprep.subr.mxu0 0.0
        %400 = vmatpush1.msra.mxu0 %v375
        %401 = vmatprep.subr.mxu0 0.0
        %402 = vmatpush1.msra.mxu0 %v376
        %403 = vmatprep.subr.mxu0 0.0
        %404 = vmatpush1.msra.mxu0 %v377
        %405 = vmatprep.subr.mxu0 0.0
        %406 = vmatpush1.msra.mxu0 %v378
        %407 = vmatprep.subr.mxu0 0.0
        %408 = vmatpush1.msra.mxu0 %v379
        %409 = vmatprep.subr.mxu0 0.0
        %410 = vmatpush1.msra.mxu0 %v380
        %411 = vmatprep.subr.mxu0 0.0
        %412 = vmatpush1.msra.mxu0 %v381
        %413 = vmatprep.subr.mxu0 0.0
        %414 = vmatpush1.msra.mxu0 %v382
        %415 = vmatprep.subr.mxu0 0.0
        %416 = vmatpush1.msra.mxu0 %v383
        %417 = vmatprep.subr.mxu0 0.0
        %418 = vmatpush1.msra.mxu0 %v384
        %419 = vmatprep.subr.mxu0 0.0
        %420 = vmatpush1.msra.mxu0 %v385
        %421 = vmatprep.subr.mxu0 0.0
        %422 = vmatpush1.msra.mxu0 %v386
        %423 = vmatprep.subr.mxu0 0.0
        %424 = vmatpush1.msra.mxu0 %v387
        %425 = vmatprep.subr.mxu0 0.0
        %426 = vmatpush1.msra.mxu0 %v388
        %427 = vmatprep.subr.mxu0 0.0
        %428 = vmatpush1.msra.mxu0 %v389
        %429 = vmatprep.subr.mxu0 0.0
        %430 = vmatpush1.msra.mxu0 0.0
        %431 = vmatprep.subr.mxu0 0.0
        %432 = vmatpush1.msra.mxu0 0.0
        %433 = vmatprep.subr.mxu0 0.0
        %434 = vmatpush1.msra.mxu0 0.0
        %435 = vmatprep.subr.mxu0 0.0
        %436 = vmatpush1.msra.mxu0 0.0
        %437 = vmatprep.subr.mxu0 0.0
        %438 = vmatpush1.msra.mxu0 0.0
        %439 = vmatprep.subr.mxu0 0.0
        %440 = vmatpush1.msra.mxu0 0.0
        %441 = vmatprep.subr.mxu0 0.0
        %442 = vmatpush1.msra.mxu0 0.0
        %443 = vmatprep.subr.mxu0 0.0
        %444 = vmatpush1.msra.mxu0 0.0
        %445 = vmatprep.subr.mxu0 0.0
        %446 = vmatpush1.msra.mxu0 0.0
        %447 = vmatprep.subr.mxu0 0.0
        %448 = vmatpush1.msra.mxu0 0.0
        %449 = vmatprep.subr.mxu0 0.0
        %450 = vmatpush1.msra.mxu0 0.0
        %451 = vmatprep.subr.mxu0 0.0
        %452 = vmatpush1.msra.mxu0 0.0
        %453 = vmatprep.subr.mxu0 0.0
        %454 = vmatpush1.msra.mxu0 0.0
        %455 = vmatprep.subr.mxu0 0.0
        %456 = vmatpush1.msra.mxu0 0.0
        %457 = vmatprep.subr.mxu0 0.0
        %458 = vmatpush1.msra.mxu0 0.0
        %459 = vmatprep.subr.mxu0 0.0
        %460 = vmatpush1.msra.mxu0 0.0
        %461 = vmatprep.mubr.f32.mxu0 0.0
        %462 = vmatmul.mubr.f32.gmra.mrb[0].mxu0 %v342
        %v463 = vpop.f32.mrb[0].mxu0
        %v464 = vadd.f32 %v395, %v463
        %v465 = vpop.f32.mrb[0].mxu0
        %466 = vmatprep.mubr.f32.mxu0 0.0
        %467 = vmatmul.mubr.f32.gmra.mrb[0].mxu0 %v343
        %v468 = vpop.f32.mrb[0].mxu0
        %v469 = vadd.f32 %v395, %v468
        %v470 = vpop.f32.mrb[0].mxu0
        %471 = vmatprep.mubr.f32.mxu0 0.0
        %472 = vmatmul.mubr.f32.gmra.mrb[0].mxu0 %v344
        %v473 = vpop.f32.mrb[0].mxu0
        %v474 = vadd.f32 %v395, %v473
        %v475 = vpop.f32.mrb[0].mxu0
        %476 = vmatprep.mubr.f32.mxu0 0.0
        %477 = vmatmul.mubr.f32.gmra.mrb[0].mxu0 %v345
        %v478 = vpop.f32.mrb[0].mxu0
        %v479 = vadd.f32 %v395, %v478
        %v480 = vpop.f32.mrb[0].mxu0
        %481 = vmatprep.mubr.f32.mxu0 0.0
        %482 = vmatmul.mubr.f32.gmra.mrb[0].mxu0 %v346
        %v483 = vpop.f32.mrb[0].mxu0
        %v484 = vadd.f32 %v395, %v483
        %v485 = vpop.f32.mrb[0].mxu0
        %486 = vmatprep.mubr.f32.mxu0 0.0
        %487 = vmatmul.mubr.f32.gmra.mrb[0].mxu0 %v347
        %v488 = vpop.f32.mrb[0].mxu0
        %v489 = vadd.f32 %v395, %v488
        %v490 = vpop.f32.mrb[0].mxu0
        %491 = vmatprep.mubr.f32.mxu0 0.0
        %492 = vmatmul.mubr.f32.gmra.mrb[0].mxu0 %v348
        %v493 = vpop.f32.mrb[0].mxu0
        %v494 = vadd.f32 %v395, %v493
        %v495 = vpop.f32.mrb[0].mxu0
        %496 = vmatprep.mubr.f32.mxu0 0.0
        %497 = vmatmul.mubr.f32.gmra.mrb[0].mxu0 %v349
        %v498 = vpop.f32.mrb[0].mxu0
        %v499 = vadd.f32 %v395, %v498
        %v500 = vpop.f32.mrb[0].mxu0
        %501 = vmatprep.mubr.f32.mxu0 0.0
        %502 = vmatmul.mubr.f32.gmra.mrb[0].mxu0 %v350
        %v503 = vpop.f32.mrb[0].mxu0
        %v504 = vadd.f32 %v395, %v503
        %v505 = vpop.f32.mrb[0].mxu0
        %506 = vmatprep.mubr.f32.mxu0 0.0
        %507 = vmatmul.mubr.f32.gmra.mrb[0].mxu0 %v351
        %v508 = vpop.f32.mrb[0].mxu0
        %v509 = vadd.f32 %v395, %v508
        %v510 = vpop.f32.mrb[0].mxu0
        %511 = vmatprep.mubr.f32.mxu0 0.0
        %512 = vmatmul.mubr.f32.gmra.mrb[0].mxu0 %v352
        %v513 = vpop.f32.mrb[0].mxu0
        %v514 = vadd.f32 %v395, %v513
        %v515 = vpop.f32.mrb[0].mxu0
        %516 = vmatprep.mubr.f32.mxu0 0.0
        %517 = vmatmul.mubr.f32.gmra.mrb[0].mxu0 %v353
        %v518 = vpop.f32.mrb[0].mxu0
        %v519 = vadd.f32 %v395, %v518
        %v520 = vpop.f32.mrb[0].mxu0
        %521 = vmatprep.mubr.f32.mxu0 0.0
        %522 = vmatmul.mubr.f32.gmra.mrb[0].mxu0 %v354
        %v523 = vpop.f32.mrb[0].mxu0
        %v524 = vadd.f32 %v395, %v523
        %v525 = vpop.f32.mrb[0].mxu0
        %526 = vmatprep.mubr.f32.mxu0 0.0
        %527 = vmatmul.mubr.f32.gmra.mrb[0].mxu0 %v355
        %v528 = vpop.f32.mrb[0].mxu0
        %v529 = vadd.f32 %v395, %v528
        %v530 = vpop.f32.mrb[0].mxu0
        %531 = vmatprep.mubr.f32.mxu0 0.0
        %532 = vmatmul.mubr.f32.gmra.mrb[0].mxu0 %v356
        %v533 = vpop.f32.mrb[0].mxu0
        %v534 = vadd.f32 %v395, %v533
        %v535 = vpop.f32.mrb[0].mxu0
        %536 = vmatprep.mubr.f32.mxu0 0.0
        %537 = vmatmul.mubr.f32.gmra.mrb[0].mxu0 %v357
        %v538 = vpop.f32.mrb[0].mxu0
        %v539 = vadd.f32 %v395, %v538
        %v540 = vpop.f32.mrb[0].mxu0
        %541 = vmatprep.mubr.f32.mxu0 0.0
        %542 = vmatmul.mubr.f32.gmra.mrb[0].mxu0 %v358
        %v543 = vpop.f32.mrb[0].mxu0
        %v544 = vadd.f32 %v395, %v543
        %v545 = vpop.f32.mrb[0].mxu0
        %546 = vmatprep.mubr.f32.mxu0 0.0
        %547 = vmatmul.mubr.f32.gmra.mrb[0].mxu0 %v359
        %v548 = vpop.f32.mrb[0].mxu0
        %v549 = vadd.f32 %v395, %v548
        %v550 = vpop.f32.mrb[0].mxu0
        %551 = vmatprep.mubr.f32.mxu0 0.0
        %552 = vmatmul.mubr.f32.gmra.mrb[0].mxu0 %v360
        %v553 = vpop.f32.mrb[0].mxu0
        %v554 = vadd.f32 %v395, %v553
        %v555 = vpop.f32.mrb[0].mxu0
        %556 = vmatprep.mubr.f32.mxu0 0.0
        %557 = vmatmul.mubr.f32.gmra.mrb[0].mxu0 %v361
        %v558 = vpop.f32.mrb[0].mxu0
        %v559 = vadd.f32 %v395, %v558
        %v560 = vpop.f32.mrb[0].mxu0
        %561 = vmatprep.mubr.f32.mxu0 0.0
        %562 = vmatmul.mubr.f32.gmra.mrb[0].mxu0 %v362
        %v563 = vpop.f32.mrb[0].mxu0
        %v564 = vadd.f32 %v395, %v563
        %v565 = vpop.f32.mrb[0].mxu0
        %566 = vmatprep.mubr.f32.mxu0 0.0
        %567 = vmatmul.mubr.f32.gmra.mrb[0].mxu0 %v363
        %v568 = vpop.f32.mrb[0].mxu0
        %v569 = vadd.f32 %v395, %v568
        %v570 = vpop.f32.mrb[0].mxu0
        %571 = vmatprep.mubr.f32.mxu0 0.0
        %572 = vmatmul.mubr.f32.gmra.mrb[0].mxu0 %v364
        %v573 = vpop.f32.mrb[0].mxu0
        %v574 = vadd.f32 %v395, %v573
        %v575 = vpop.f32.mrb[0].mxu0
        %576 = vmatprep.mubr.f32.mxu0 0.0
        %577 = vmatmul.mubr.f32.gmra.mrb[0].mxu0 %v365
        %v578 = vpop.f32.mrb[0].mxu0
        %v579 = vadd.f32 %v395, %v578
        %v580 = vpop.f32.mrb[0].mxu0
        %581 = vmatprep.mubr.f32.mxu0 0.0
        %582 = vmatmul.mubr.f32.gmra.mrb[0].mxu0 %v366
        %v583 = vpop.f32.mrb[0].mxu0
        %v584 = vadd.f32 %v395, %v583
        %v585 = vpop.f32.mrb[0].mxu0
        %586 = vmatprep.mubr.f32.mxu0 0.0
        %587 = vmatmul.mubr.f32.gmra.mrb[0].mxu0 %v367
        %v588 = vpop.f32.mrb[0].mxu0
        %v589 = vadd.f32 %v395, %v588
        %v590 = vpop.f32.mrb[0].mxu0
        %591 = vmatprep.mubr.f32.mxu0 0.0
        %592 = vmatmul.mubr.f32.gmra.mrb[0].mxu0 %v368
        %v593 = vpop.f32.mrb[0].mxu0
        %v594 = vadd.f32 %v395, %v593
        %v595 = vpop.f32.mrb[0].mxu0
        %596 = vmatprep.mubr.f32.mxu0 0.0
        %597 = vmatmul.mubr.f32.gmra.mrb[0].mxu0 %v369
        %v598 = vpop.f32.mrb[0].mxu0
        %v599 = vadd.f32 %v395, %v598
        %v600 = vpop.f32.mrb[0].mxu0
        %601 = vmatprep.mubr.f32.mxu0 0.0
        %602 = vmatmul.mubr.f32.gmra.mrb[0].mxu0 %v370
        %v603 = vpop.f32.mrb[0].mxu0
        %v604 = vadd.f32 %v395, %v603
        %v605 = vpop.f32.mrb[0].mxu0
        %606 = vmatprep.mubr.f32.mxu0 0.0
        %607 = vmatmul.mubr.f32.gmra.mrb[0].mxu0 %v371
        %v608 = vpop.f32.mrb[0].mxu0
        %v609 = vadd.f32 %v395, %v608
        %v610 = vpop.f32.mrb[0].mxu0
        %611 = vmatprep.mubr.f32.mxu0 0.0
        %612 = vmatmul.mubr.f32.gmra.mrb[0].mxu0 %v372
        %v613 = vpop.f32.mrb[0].mxu0
        %v614 = vadd.f32 %v395, %v613
        %v615 = vpop.f32.mrb[0].mxu0
        %616 = vmatprep.mubr.f32.mxu0 0.0
        %617 = vmatmul.mubr.f32.gmra.mrb[0].mxu0 %v373
        %v618 = vpop.f32.mrb[0].mxu0
        %v619 = vadd.f32 %v395, %v618
        %v620 = vpop.f32.mrb[0].mxu0
        %621 = vdwg.mxu0
        %v622 = vmax.f32 %v464, 0.0
        %v623 = vmax.f32 %v469, 0.0
        %v624 = vmax.f32 %v474, 0.0
        %v625 = vmax.f32 %v479, 0.0
        %v626 = vmax.f32 %v484, 0.0
        %v627 = vmax.f32 %v489, 0.0
        %v628 = vmax.f32 %v494, 0.0
        %v629 = vmax.f32 %v499, 0.0
        %v630 = vmax.f32 %v504, 0.0
        %v631 = vmax.f32 %v509, 0.0
        %v632 = vmax.f32 %v514, 0.0
        %v633 = vmax.f32 %v519, 0.0
        %v634 = vmax.f32 %v524, 0.0
        %v635 = vmax.f32 %v529, 0.0
        %v636 = vmax.f32 %v534, 0.0
        %v637 = vmax.f32 %v539, 0.0
        %v638 = vmax.f32 %v544, 0.0
        %v639 = vmax.f32 %v549, 0.0
        %v640 = vmax.f32 %v554, 0.0
        %v641 = vmax.f32 %v559, 0.0
        %v642 = vmax.f32 %v564, 0.0
        %v643 = vmax.f32 %v569, 0.0
        %v644 = vmax.f32 %v574, 0.0
        %v645 = vmax.f32 %v579, 0.0
        %v646 = vmax.f32 %v584, 0.0
        %v647 = vmax.f32 %v589, 0.0
        %v648 = vmax.f32 %v594, 0.0
        %v649 = vmax.f32 %v599, 0.0
        %v650 = vmax.f32 %v604, 0.0
        %v651 = vmax.f32 %v609, 0.0
        %v652 = vmax.f32 %v614, 0.0
        %v653 = vmax.f32 %v619, 0.0
        %v654 = vld [vmem:[#allocation8] sm:$0xff]
        %v655 = vld [vmem:[#allocation8 + $0x8] sm:$0xff]
        %v656 = vld [vmem:[#allocation8 + $0x10] sm:$0xff]
        %v657 = vld [vmem:[#allocation8 + $0x18] sm:$0xff]
        %v658 = vld [vmem:[#allocation8 + $0x20] sm:$0xff]
        %v659 = vld [vmem:[#allocation8 + $0x28] sm:$0xff]
        %v660 = vld [vmem:[#allocation8 + $0x30] sm:$0xff]
        %v661 = vld [vmem:[#allocation8 + $0x38] sm:$0xff]
        %v662 = vld [vmem:[#allocation8 + $0x40] sm:$0xff]
        %v663 = vld [vmem:[#allocation8 + $0x48] sm:$0xff]
        %v664 = vld [vmem:[#allocation8 + $0x50] sm:$0xff]
        %v665 = vld [vmem:[#allocation8 + $0x58] sm:$0xff]
        %v666 = vld [vmem:[#allocation8 + $0x60] sm:$0xff]
        %v667 = vld [vmem:[#allocation8 + $0x68] sm:$0xff]
        %v668 = vld [vmem:[#allocation8 + $0x70] sm:$0xff]
        %v669 = vld [vmem:[#allocation8 + $0x78] sm:$0xff]
        %670 = vmatprep.subr.mxu0 0.0
        %671 = vmatpush1.msra.mxu0 %v654
        %672 = vmatprep.subr.mxu0 0.0
        %673 = vmatpush1.msra.mxu0 %v655
        %674 = vmatprep.subr.mxu0 0.0
        %675 = vmatpush1.msra.mxu0 %v656
        %676 = vmatprep.subr.mxu0 0.0
        %677 = vmatpush1.msra.mxu0 %v657
        %678 = vmatprep.subr.mxu0 0.0
        %679 = vmatpush1.msra.mxu0 %v658
        %680 = vmatprep.subr.mxu0 0.0
        %681 = vmatpush1.msra.mxu0 %v659
        %682 = vmatprep.subr.mxu0 0.0
        %683 = vmatpush1.msra.mxu0 %v660
        %684 = vmatprep.subr.mxu0 0.0
        %685 = vmatpush1.msra.mxu0 %v661
        %686 = vmatprep.subr.mxu0 0.0
        %687 = vmatpush1.msra.mxu0 %v662
        %688 = vmatprep.subr.mxu0 0.0
        %689 = vmatpush1.msra.mxu0 %v663
        %690 = vmatprep.subr.mxu0 0.0
        %691 = vmatpush1.msra.mxu0 %v664
        %692 = vmatprep.subr.mxu0 0.0
        %693 = vmatpush1.msra.mxu0 %v665
        %694 = vmatprep.subr.mxu0 0.0
        %695 = vmatpush1.msra.mxu0 %v666
        %696 = vmatprep.subr.mxu0 0.0
        %697 = vmatpush1.msra.mxu0 %v667
        %698 = vmatprep.subr.mxu0 0.0
        %699 = vmatpush1.msra.mxu0 %v668
        %700 = vmatprep.subr.mxu0 0.0
        %701 = vmatpush1.msra.mxu0 %v669
        %702 = vmatprep.subr.mxu0 0.0
        %703 = vmatpush1.msra.mxu0 0.0
        %704 = vmatprep.subr.mxu0 0.0
        %705 = vmatpush1.msra.mxu0 0.0
        %706 = vmatprep.subr.mxu0 0.0
        %707 = vmatpush1.msra.mxu0 0.0
        %708 = vmatprep.subr.mxu0 0.0
        %709 = vmatpush1.msra.mxu0 0.0
        %710 = vmatprep.subr.mxu0 0.0
        %711 = vmatpush1.msra.mxu0 0.0
        %712 = vmatprep.subr.mxu0 0.0
        %713 = vmatpush1.msra.mxu0 0.0
        %714 = vmatprep.subr.mxu0 0.0
        %715 = vmatpush1.msra.mxu0 0.0
        %716 = vmatprep.subr.mxu0 0.0
        %717 = vmatpush1.msra.mxu0 0.0
        %718 = vmatprep.subr.mxu0 0.0
        %719 = vmatpush1.msra.mxu0 0.0
        %720 = vmatprep.subr.mxu0 0.0
        %721 = vmatpush1.msra.mxu0 0.0
        %722 = vmatprep.subr.mxu0 0.0
        %723 = vmatpush1.msra.mxu0 0.0
        %724 = vmatprep.subr.mxu0 0.0
        %725 = vmatpush1.msra.mxu0 0.0
        %726 = vmatprep.subr.mxu0 0.0
        %727 = vmatpush1.msra.mxu0 0.0
        %728 = vmatprep.subr.mxu0 0.0
        %729 = vmatpush1.msra.mxu0 0.0
        %730 = vmatprep.subr.mxu0 0.0
        %731 = vmatpush1.msra.mxu0 0.0
        %732 = vmatprep.subr.mxu0 0.0
        %733 = vmatpush1.msra.mxu0 0.0
        %734 = vmatprep.mubr.f32.mxu0 0.0
        %735 = vmatmul.mubr.f32.gmra.mrb[0].mxu0 %v622
        %v736 = vpop.f32.mrb[0].mxu0
        %v737 = vadd.f32 0.0, %v736
        %v738 = vpop.f32.mrb[0].mxu0
        %739 = vmatprep.mubr.f32.mxu0 0.0
        %740 = vmatmul.mubr.f32.gmra.mrb[0].mxu0 %v623
        %v741 = vpop.f32.mrb[0].mxu0
        %v742 = vadd.f32 0.0, %v741
        %v743 = vpop.f32.mrb[0].mxu0
        %744 = vmatprep.mubr.f32.mxu0 0.0
        %745 = vmatmul.mubr.f32.gmra.mrb[0].mxu0 %v624
        %v746 = vpop.f32.mrb[0].mxu0
        %v747 = vadd.f32 0.0, %v746
        %v748 = vpop.f32.mrb[0].mxu0
        %749 = vmatprep.mubr.f32.mxu0 0.0
        %750 = vmatmul.mubr.f32.gmra.mrb[0].mxu0 %v625
        %v751 = vpop.f32.mrb[0].mxu0
        %v752 = vadd.f32 0.0, %v751
        %v753 = vpop.f32.mrb[0].mxu0
        %754 = vmatprep.mubr.f32.mxu0 0.0
        %755 = vmatmul.mubr.f32.gmra.mrb[0].mxu0 %v626
        %v756 = vpop.f32.mrb[0].mxu0
        %v757 = vadd.f32 0.0, %v756
        %v758 = vpop.f32.mrb[0].mxu0
        %759 = vmatprep.mubr.f32.mxu0 0.0
        %760 = vmatmul.mubr.f32.gmra.mrb[0].mxu0 %v627
        %v761 = vpop.f32.mrb[0].mxu0
        %v762 = vadd.f32 0.0, %v761
        %v763 = vpop.f32.mrb[0].mxu0
        %764 = vmatprep.mubr.f32.mxu0 0.0
        %765 = vmatmul.mubr.f32.gmra.mrb[0].mxu0 %v628
        %v766 = vpop.f32.mrb[0].mxu0
        %v767 = vadd.f32 0.0, %v766
        %v768 = vpop.f32.mrb[0].mxu0
        %769 = vmatprep.mubr.f32.mxu0 0.0
        %770 = vmatmul.mubr.f32.gmra.mrb[0].mxu0 %v629
        %v771 = vpop.f32.mrb[0].mxu0
        %v772 = vadd.f32 0.0, %v771
        %v773 = vpop.f32.mrb[0].mxu0
        %774 = vmatprep.mubr.f32.mxu0 0.0
        %775 = vmatmul.mubr.f32.gmra.mrb[0].mxu0 %v630
        %v776 = vpop.f32.mrb[0].mxu0
        %v777 = vadd.f32 0.0, %v776
        %v778 = vpop.f32.mrb[0].mxu0
        %779 = vmatprep.mubr.f32.mxu0 0.0
        %780 = vmatmul.mubr.f32.gmra.mrb[0].mxu0 %v631
        %v781 = vpop.f32.mrb[0].mxu0
        %v782 = vadd.f32 0.0, %v781
        %v783 = vpop.f32.mrb[0].mxu0
        %784 = vmatprep.mubr.f32.mxu0 0.0
        %785 = vmatmul.mubr.f32.gmra.mrb[0].mxu0 %v632
        %v786 = vpop.f32.mrb[0].mxu0
        %v787 = vadd.f32 0.0, %v786
        %v788 = vpop.f32.mrb[0].mxu0
        %789 = vmatprep.mubr.f32.mxu0 0.0
        %790 = vmatmul.mubr.f32.gmra.mrb[0].mxu0 %v633
        %v791 = vpop.f32.mrb[0].mxu0
        %v792 = vadd.f32 0.0, %v791
        %v793 = vpop.f32.mrb[0].mxu0
        %794 = vmatprep.mubr.f32.mxu0 0.0
        %795 = vmatmul.mubr.f32.gmra.mrb[0].mxu0 %v634
        %v796 = vpop.f32.mrb[0].mxu0
        %v797 = vadd.f32 0.0, %v796
        %v798 = vpop.f32.mrb[0].mxu0
        %799 = vmatprep.mubr.f32.mxu0 0.0
        %800 = vmatmul.mubr.f32.gmra.mrb[0].mxu0 %v635
        %v801 = vpop.f32.mrb[0].mxu0
        %v802 = vadd.f32 0.0, %v801
        %v803 = vpop.f32.mrb[0].mxu0
        %804 = vmatprep.mubr.f32.mxu0 0.0
        %805 = vmatmul.mubr.f32.gmra.mrb[0].mxu0 %v636
        %v806 = vpop.f32.mrb[0].mxu0
        %v807 = vadd.f32 0.0, %v806
        %v808 = vpop.f32.mrb[0].mxu0
        %809 = vmatprep.mubr.f32.mxu0 0.0
        %810 = vmatmul.mubr.f32.gmra.mrb[0].mxu0 %v637
        %v811 = vpop.f32.mrb[0].mxu0
        %v812 = vadd.f32 0.0, %v811
        %v813 = vpop.f32.mrb[0].mxu0
        %814 = vmatprep.mubr.f32.mxu0 0.0
        %815 = vmatmul.mubr.f32.gmra.mrb[0].mxu0 %v638
        %v816 = vpop.f32.mrb[0].mxu0
        %v817 = vadd.f32 0.0, %v816
        %v818 = vpop.f32.mrb[0].mxu0
        %819 = vmatprep.mubr.f32.mxu0 0.0
        %820 = vmatmul.mubr.f32.gmra.mrb[0].mxu0 %v639
        %v821 = vpop.f32.mrb[0].mxu0
        %v822 = vadd.f32 0.0, %v821
        %v823 = vpop.f32.mrb[0].mxu0
        %824 = vmatprep.mubr.f32.mxu0 0.0
        %825 = vmatmul.mubr.f32.gmra.mrb[0].mxu0 %v640
        %v826 = vpop.f32.mrb[0].mxu0
        %v827 = vadd.f32 0.0, %v826
        %v828 = vpop.f32.mrb[0].mxu0
        %829 = vmatprep.mubr.f32.mxu0 0.0
        %830 = vmatmul.mubr.f32.gmra.mrb[0].mxu0 %v641
        %v831 = vpop.f32.mrb[0].mxu0
        %v832 = vadd.f32 0.0, %v831
        %v833 = vpop.f32.mrb[0].mxu0
        %834 = vmatprep.mubr.f32.mxu0 0.0
        %835 = vmatmul.mubr.f32.gmra.mrb[0].mxu0 %v642
        %v836 = vpop.f32.mrb[0].mxu0
        %v837 = vadd.f32 0.0, %v836
        %v838 = vpop.f32.mrb[0].mxu0
        %839 = vmatprep.mubr.f32.mxu0 0.0
        %840 = vmatmul.mubr.f32.gmra.mrb[0].mxu0 %v643
        %v841 = vpop.f32.mrb[0].mxu0
        %v842 = vadd.f32 0.0, %v841
        %v843 = vpop.f32.mrb[0].mxu0
        %844 = vmatprep.mubr.f32.mxu0 0.0
        %845 = vmatmul.mubr.f32.gmra.mrb[0].mxu0 %v644
        %v846 = vpop.f32.mrb[0].mxu0
        %v847 = vadd.f32 0.0, %v846
        %v848 = vpop.f32.mrb[0].mxu0
        %849 = vmatprep.mubr.f32.mxu0 0.0
        %850 = vmatmul.mubr.f32.gmra.mrb[0].mxu0 %v645
        %v851 = vpop.f32.mrb[0].mxu0
        %v852 = vadd.f32 0.0, %v851
        %v853 = vpop.f32.mrb[0].mxu0
        %854 = vmatprep.mubr.f32.mxu0 0.0
        %855 = vmatmul.mubr.f32.gmra.mrb[0].mxu0 %v646
        %v856 = vpop.f32.mrb[0].mxu0
        %v857 = vadd.f32 0.0, %v856
        %v858 = vpop.f32.mrb[0].mxu0
        %859 = vmatprep.mubr.f32.mxu0 0.0
        %860 = vmatmul.mubr.f32.gmra.mrb[0].mxu0 %v647
        %v861 = vpop.f32.mrb[0].mxu0
        %v862 = vadd.f32 0.0, %v861
        %v863 = vpop.f32.mrb[0].mxu0
        %864 = vmatprep.mubr.f32.mxu0 0.0
        %865 = vmatmul.mubr.f32.gmra.mrb[0].mxu0 %v648
        %v866 = vpop.f32.mrb[0].mxu0
        %v867 = vadd.f32 0.0, %v866
        %v868 = vpop.f32.mrb[0].mxu0
        %869 = vmatprep.mubr.f32.mxu0 0.0
        %870 = vmatmul.mubr.f32.gmra.mrb[0].mxu0 %v649
        %v871 = vpop.f32.mrb[0].mxu0
        %v872 = vadd.f32 0.0, %v871
        %v873 = vpop.f32.mrb[0].mxu0
        %874 = vmatprep.mubr.f32.mxu0 0.0
        %875 = vmatmul.mubr.f32.gmra.mrb[0].mxu0 %v650
        %v876 = vpop.f32.mrb[0].mxu0
        %v877 = vadd.f32 0.0, %v876
        %v878 = vpop.f32.mrb[0].mxu0
        %879 = vmatprep.mubr.f32.mxu0 0.0
        %880 = vmatmul.mubr.f32.gmra.mrb[0].mxu0 %v651
        %v881 = vpop.f32.mrb[0].mxu0
        %v882 = vadd.f32 0.0, %v881
        %v883 = vpop.f32.mrb[0].mxu0
        %884 = vmatprep.mubr.f32.mxu0 0.0
        %885 = vmatmul.mubr.f32.gmra.mrb[0].mxu0 %v652
        %v886 = vpop.f32.mrb[0].mxu0
        %v887 = vadd.f32 0.0, %v886
        %v888 = vpop.f32.mrb[0].mxu0
        %889 = vmatprep.mubr.f32.mxu0 0.0
        %890 = vmatmul.mubr.f32.gmra.mrb[0].mxu0 %v653
        %v891 = vpop.f32.mrb[0].mxu0
        %v892 = vadd.f32 0.0, %v891
        %v893 = vpop.f32.mrb[0].mxu0
        %894 = vdwg.mxu0
        %v895 = vld [vmem:[%s297] sm:$0xff]
        %v896 = vld [vmem:[%s297 + $0x8] sm:$0xff]
        %v897 = vld [vmem:[%s297 + $0x10] sm:$0xff]
        %v898 = vld [vmem:[%s297 + $0x18] sm:$0xff]
        %v899 = vld [vmem:[%s297 + $0x20] sm:$0xff]
        %v900 = vld [vmem:[%s297 + $0x28] sm:$0xff]
        %v901 = vld [vmem:[%s297 + $0x30] sm:$0xff]
        %v902 = vld [vmem:[%s297 + $0x38] sm:$0xff]
        %v903 = vld [vmem:[%s297 + $0x40] sm:$0xff]
        %v904 = vld [vmem:[%s297 + $0x48] sm:$0xff]
        %v905 = vld [vmem:[%s297 + $0x50] sm:$0xff]
        %v906 = vld [vmem:[%s297 + $0x58] sm:$0xff]
        %v907 = vld [vmem:[%s297 + $0x60] sm:$0xff]
        %v908 = vld [vmem:[%s297 + $0x68] sm:$0xff]
        %v909 = vld [vmem:[%s297 + $0x70] sm:$0xff]
        %v910 = vld [vmem:[%s297 + $0x78] sm:$0xff]
        %v911 = vld [vmem:[%s297 + $0x80] sm:$0xff]
        %v912 = vld [vmem:[%s297 + $0x88] sm:$0xff]
        %v913 = vld [vmem:[%s297 + $0x90] sm:$0xff]
        %v914 = vld [vmem:[%s297 + $0x98] sm:$0xff]
        %v915 = vld [vmem:[%s297 + $0xa0] sm:$0xff]
        %v916 = vld [vmem:[%s297 + $0xa8] sm:$0xff]
        %v917 = vld [vmem:[%s297 + $0xb0] sm:$0xff]
        %v918 = vld [vmem:[%s297 + $0xb8] sm:$0xff]
        %v919 = vld [vmem:[%s297 + $0xc0] sm:$0xff]
        %v920 = vld [vmem:[%s297 + $0xc8] sm:$0xff]
        %v921 = vld [vmem:[%s297 + $0xd0] sm:$0xff]
        %v922 = vld [vmem:[%s297 + $0xd8] sm:$0xff]
        %v923 = vld [vmem:[%s297 + $0xe0] sm:$0xff]
        %v924 = vld [vmem:[%s297 + $0xe8] sm:$0xff]
        %v925 = vld [vmem:[%s297 + $0xf0] sm:$0xff]
        %v926 = vld [vmem:[%s297 + $0xf8] sm:$0xff]
        %v927 = vmul.f32 %v895, 2.0
        %v928 = vmul.f32 %v896, 2.0
        %v929 = vmul.f32 %v897, 2.0
        %v930 = vmul.f32 %v898, 2.0
        %v931 = vmul.f32 %v899, 2.0
        %v932 = vmul.f32 %v900, 2.0
        %v933 = vmul.f32 %v901, 2.0
        %v934 = vmul.f32 %v902, 2.0
        %v935 = vmul.f32 %v903, 2.0
        %v936 = vmul.f32 %v904, 2.0
        %v937 = vmul.f32 %v905, 2.0
        %v938 = vmul.f32 %v906, 2.0
        %v939 = vmul.f32 %v907, 2.0
        %v940 = vmul.f32 %v908, 2.0
        %v941 = vmul.f32 %v909, 2.0
        %v942 = vmul.f32 %v910, 2.0
        %v943 = vmul.f32 %v911, 2.0
        %v944 = vmul.f32 %v912, 2.0
        %v945 = vmul.f32 %v913, 2.0
        %v946 = vmul.f32 %v914, 2.0
        %v947 = vmul.f32 %v915, 2.0
        %v948 = vmul.f32 %v916, 2.0
        %v949 = vmul.f32 %v917, 2.0
        %v950 = vmul.f32 %v918, 2.0
        %v951 = vmul.f32 %v919, 2.0
        %v952 = vmul.f32 %v920, 2.0
        %v953 = vmul.f32 %v921, 2.0
        %v954 = vmul.f32 %v922, 2.0
        %v955 = vmul.f32 %v923, 2.0
        %v956 = vmul.f32 %v924, 2.0
        %v957 = vmul.f32 %v925, 2.0
        %v958 = vmul.f32 %v926, 2.0
        %v959 = vsub.f32 %v927, %v342
        %v960 = vsub.f32 %v928, %v343
        %v961 = vsub.f32 %v929, %v344
        %v962 = vsub.f32 %v930, %v345
        %v963 = vsub.f32 %v931, %v346
        %v964 = vsub.f32 %v932, %v347
        %v965 = vsub.f32 %v933, %v348
        %v966 = vsub.f32 %v934, %v349
        %v967 = vsub.f32 %v935, %v350
        %v968 = vsub.f32 %v936, %v351
        %v969 = vsub.f32 %v937, %v352
        %v970 = vsub.f32 %v938, %v353
        %v971 = vsub.f32 %v939, %v354
        %v972 = vsub.f32 %v940, %v355
        %v973 = vsub.f32 %v941, %v356
        %v974 = vsub.f32 %v942, %v357
        %v975 = vsub.f32 %v943, %v358
        %v976 = vsub.f32 %v944, %v359
        %v977 = vsub.f32 %v945, %v360
        %v978 = vsub.f32 %v946, %v361
        %v979 = vsub.f32 %v947, %v362
        %v980 = vsub.f32 %v948, %v363
        %v981 = vsub.f32 %v949, %v364
        %v982 = vsub.f32 %v950, %v365
        %v983 = vsub.f32 %v951, %v366
        %v984 = vsub.f32 %v952, %v367
        %v985 = vsub.f32 %v953, %v368
        %v986 = vsub.f32 %v954, %v369
        %v987 = vsub.f32 %v955, %v370
        %v988 = vsub.f32 %v956, %v371
        %v989 = vsub.f32 %v957, %v372
        %v990 = vsub.f32 %v958, %v373
        %v991 = vsub.f32 %v959, %v737
        %v992 = vsub.f32 %v960, %v742
        %v993 = vsub.f32 %v961, %v747
        %v994 = vsub.f32 %v962, %v752
        %v995 = vsub.f32 %v963, %v757
        %v996 = vsub.f32 %v964, %v762
        %v997 = vsub.f32 %v965, %v767
        %v998 = vsub.f32 %v966, %v772
        %v999 = vsub.f32 %v967, %v777
        %v1000 = vsub.f32 %v968, %v782
        %v1001 = vsub.f32 %v969, %v787
        %v1002 = vsub.f32 %v970, %v792
        %v1003 = vsub.f32 %v971, %v797
        %v1004 = vsub.f32 %v972, %v802
        %v1005 = vsub.f32 %v973, %v807
        %v1006 = vsub.f32 %v974, %v812
        %v1007 = vsub.f32 %v975, %v817
        %v1008 = vsub.f32 %v976, %v822
        %v1009 = vsub.f32 %v977, %v827
        %v1010 = vsub.f32 %v978, %v832
        %v1011 = vsub.f32 %v979, %v837
        %v1012 = vsub.f32 %v980, %v842
        %v1013 = vsub.f32 %v981, %v847
        %v1014 = vsub.f32 %v982, %v852
        %v1015 = vsub.f32 %v983, %v857
        %v1016 = vsub.f32 %v984, %v862
        %v1017 = vsub.f32 %v985, %v867
        %v1018 = vsub.f32 %v986, %v872
        %v1019 = vsub.f32 %v987, %v877
        %v1020 = vsub.f32 %v988, %v882
        %v1021 = vsub.f32 %v989, %v887
        %v1022 = vsub.f32 %v990, %v892
        %v1023 = vld [vmem:[%s5] sm:$0x1]
        %v1025 = vlaneseq
        %v1026 = vshrl.u32 %v1025, 7
        %v1027 = vsub.s32 0, %v1026
        %v1028 = vrot.slane %v1023, %v1027
        %v1030 = vsub.f32 %v991, %v1028
        %v1031 = vsub.f32 %v992, %v1028
        %v1032 = vsub.f32 %v993, %v1028
        %v1033 = vsub.f32 %v994, %v1028
        %v1034 = vsub.f32 %v995, %v1028
        %v1035 = vsub.f32 %v996, %v1028
        %v1036 = vsub.f32 %v997, %v1028
        %v1037 = vsub.f32 %v998, %v1028
        %v1038 = vsub.f32 %v999, %v1028
        %v1039 = vsub.f32 %v1000, %v1028
        %v1040 = vsub.f32 %v1001, %v1028
        %v1041 = vsub.f32 %v1002, %v1028
        %v1042 = vsub.f32 %v1003, %v1028
        %v1043 = vsub.f32 %v1004, %v1028
        %v1044 = vsub.f32 %v1005, %v1028
        %v1045 = vsub.f32 %v1006, %v1028
        %v1046 = vsub.f32 %v1007, %v1028
        %v1047 = vsub.f32 %v1008, %v1028
        %v1048 = vsub.f32 %v1009, %v1028
        %v1049 = vsub.f32 %v1010, %v1028
        %v1050 = vsub.f32 %v1011, %v1028
        %v1051 = vsub.f32 %v1012, %v1028
        %v1052 = vsub.f32 %v1013, %v1028
        %v1053 = vsub.f32 %v1014, %v1028
        %v1054 = vsub.f32 %v1015, %v1028
        %v1055 = vsub.f32 %v1016, %v1028
        %v1056 = vsub.f32 %v1017, %v1028
        %v1057 = vsub.f32 %v1018, %v1028
        %v1058 = vsub.f32 %v1019, %v1028
        %v1059 = vsub.f32 %v1020, %v1028
        %v1060 = vsub.f32 %v1021, %v1028
        %v1061 = vsub.f32 %v1022, %v1028
        %1062 = vst [vmem:[%s338] sm:$0xff] %v1030
        %1063 = vst [vmem:[%s338 + $0x8] sm:$0xff] %v1031
        %1064 = vst [vmem:[%s338 + $0x10] sm:$0xff] %v1032
        %1065 = vst [vmem:[%s338 + $0x18] sm:$0xff] %v1033
        %1066 = vst [vmem:[%s338 + $0x20] sm:$0xff] %v1034
        %1067 = vst [vmem:[%s338 + $0x28] sm:$0xff] %v1035
        %1068 = vst [vmem:[%s338 + $0x30] sm:$0xff] %v1036
        %1069 = vst [vmem:[%s338 + $0x38] sm:$0xff] %v1037
        %1070 = vst [vmem:[%s338 + $0x40] sm:$0xff] %v1038
        %1071 = vst [vmem:[%s338 + $0x48] sm:$0xff] %v1039
        %1072 = vst [vmem:[%s338 + $0x50] sm:$0xff] %v1040
        %1073 = vst [vmem:[%s338 + $0x58] sm:$0xff] %v1041
        %1074 = vst [vmem:[%s338 + $0x60] sm:$0xff] %v1042
        %1075 = vst [vmem:[%s338 + $0x68] sm:$0xff] %v1043
        %1076 = vst [vmem:[%s338 + $0x70] sm:$0xff] %v1044
        %1077 = vst [vmem:[%s338 + $0x78] sm:$0xff] %v1045
        %1078 = vst [vmem:[%s338 + $0x80] sm:$0xff] %v1046
        %1079 = vst [vmem:[%s338 + $0x88] sm:$0xff] %v1047
        %1080 = vst [vmem:[%s338 + $0x90] sm:$0xff] %v1048
        %1081 = vst [vmem:[%s338 + $0x98] sm:$0xff] %v1049
        %1082 = vst [vmem:[%s338 + $0xa0] sm:$0xff] %v1050
        %1083 = vst [vmem:[%s338 + $0xa8] sm:$0xff] %v1051
        %1084 = vst [vmem:[%s338 + $0xb0] sm:$0xff] %v1052
        %1085 = vst [vmem:[%s338 + $0xb8] sm:$0xff] %v1053
        %1086 = vst [vmem:[%s338 + $0xc0] sm:$0xff] %v1054
        %1087 = vst [vmem:[%s338 + $0xc8] sm:$0xff] %v1055
        %1088 = vst [vmem:[%s338 + $0xd0] sm:$0xff] %v1056
        %1089 = vst [vmem:[%s338 + $0xd8] sm:$0xff] %v1057
        %1090 = vst [vmem:[%s338 + $0xe0] sm:$0xff] %v1058
        %1091 = vst [vmem:[%s338 + $0xe8] sm:$0xff] %v1059
        %1092 = vst [vmem:[%s338 + $0xf0] sm:$0xff] %v1060
        %1093 = vst [vmem:[%s338 + $0xf8] sm:$0xff] %v1061
        %s1094 = sand.u32 %s171, 1
        %s1095 = scalar_lea.sflag [#allocation4], %s1094
        %s1096 = sand.u32 %s171, 1
        %s1097 = smul.addr %s1096, 256
        %s1098 = scalar_lea.vmem [#allocation10], %s1097
        // Predicated region
        $region61: #{koopman_forward.1} parent=43 // pred_check
          %p1099 = pneg %p181
        $region62: #{koopman_forward.1} parent=43 // pred_check_branch
          %1101 = sbr.rel (%p1099) target = $region64
        $region63: #{koopman_forward.1} parent=43 // pred_region
          %s1102 = smul.u32 32, %s27
          %s1104 = ssub.s32 4096, 4096
          %1105 = vsyncadd %s1095, %s1104
          %s1106 = smul.addr %s1102, 128
          %s1107 = scalar_lea.hbm %s6, %s1106
          %s1108 = sshll.u32 %s1098, 4
          %s1109 = int_to_ptr.vmem [resolvable:$true] %s1108
          %1114 = dma.vmem_to_hbm [thread:$0]  %s1109, 4096, %s1107, %s1095, 128, 128, 8
        $region64: #{koopman_forward.1} parent=43 // pred_fallthru
          _
      $region44: #{koopman_forward.1} parent=5 // pred_fallthru
        _
      %p1115 = scmp.le.s32.totalorder 2, %s22
      // Predicated region
      $region65: #{koopman_forward.1} parent=5 // pred_check
        %p1116 = pneg %p1115
      $region66: #{koopman_forward.1} parent=5 // pred_check_branch
        %1118 = sbr.rel (%p1116) target = $region68
      $region67: #{koopman_forward.1} parent=5 // pred_region
        %s1119 = ssub.s32 %s22, 2
        // Predicated region
        $region69: #{koopman_forward.1} parent=67 // pred_check
          %p1120 = pneg %p187
        $region70: #{koopman_forward.1} parent=67 // pred_check_branch
          %1122 = sbr.rel (%p1120) target = $region72
        $region71: #{koopman_forward.1} parent=67 // pred_region
          %s1123 = sand.u32 %s172, 1
          %s1124 = scalar_lea.sflag [#allocation4], %s1123
          %s1125 = sand.u32 %s172, 1
          %s1126 = smul.addr %s1125, 256
          %s1127 = scalar_lea.vmem [#allocation10], %s1126
          %1128 = dma.done %s1124, 4096
        $region72: #{koopman_forward.1} parent=67 // pred_fallthru
          _
      $region68: #{koopman_forward.1} parent=5 // pred_fallthru
        _
    $region6: #{koopman_forward.1} parent=1 // loop_footer
      %s26 = sadd.s32 1, %s22
    $region7: #{koopman_forward.1} parent=1 // loop_footer_branch
      %21 = sbr.rel target = $region3
    $region8: #{koopman_forward.1} parent=1 // loop_exit
      _
    %1129 = vsyncpa [#allocation3], 1
    %s1130 = scalar_lea.sflag [#allocation3], 1
    %1131 = vsyncpa %s1130, 1
    %1132 = vsyncpa [#allocation6], 1
    %s1133 = scalar_lea.sflag [#allocation6], 1
    %1134 = vsyncpa %s1133, 1
    %1135 = vsyncpa [#allocation9], 1
    %1136 = vsyncpa [#allocation4], 1
    %s1137 = scalar_lea.sflag [#allocation4], 1
    %1138 = vsyncpa %s1137, 1

</llo_original>
